<compile_context>
chip_gen: v5e
topology: v5e:2x2
jax: 0.10.0
libtpu: 0.0.40
codegen_flags: <defaults>
</compile_context>

<pallas_src>
import jax
import jax.numpy as jnp
from jax.experimental import pallas as pl
from jax.experimental.pallas import tpu as pltpu

_LANE = 128  # vreg lane width


def _round_up(v, m):
    return ((v + m - 1) // m) * m


def _sublane(dtype):
    # f32 -> 8, bf16 -> 16, int8/fp8 -> 32 (sub-32-bit dtypes pack sublanes).
    return 8 * (4 // jnp.dtype(dtype).itemsize)


def _scale_bias_kernel(wb_ref, x_ref, o_ref):
    # wb_ref: (2,) f32 in SMEM -> [weight_scalar, bias_scalar]
    # x_ref / o_ref: (block_rows, 128) tiles in VMEM.
    x = x_ref[...].astype(jnp.float32)
    o_ref[...] = (x * wb_ref[0] + wb_ref[1]).astype(o_ref.dtype)


def _pick_block_rows(rows, cap_rows, sub):
    """Rows per grid step: multiple of `sub` (or the full dim), capped, and
    chosen so the grid has >= 2 steps when there is enough work (v7x 2-TC)."""
    cap = max(sub, (cap_rows // sub) * sub)
    if rows <= sub:
        return rows  # single full-dim block (legal even if not a multiple of 8)
    return min(cap, _round_up(pl.cdiv(rows, 2), sub))


def _lane_dense_scale_bias(x_flat, wb, *, block_rows=4096):
    """out[i] = x_flat[i] * wb[0] + wb[1] on a lane-dense (rows, 128) slab."""
    n = x_flat.shape[0]
    lane = _LANE
    itemsize = jnp.dtype(x_flat.dtype).itemsize
    sub = _sublane(x_flat.dtype)

    padded = (n % lane) != 0
    rows = pl.cdiv(n, lane)
    if padded:
        # Pad only up to the next multiple of 128 (tail < 128 elements).
        x2d = jnp.pad(x_flat, (0, rows * lane - n)).reshape(rows, lane)
    else:
        # Free reshape: zero extra HBM traffic around the kernel.
        x2d = x_flat.reshape(rows, lane)

    br = _pick_block_rows(rows, block_rows, sub)
    grid = (pl.cdiv(rows, br),)  # last block may be partial -> Pallas masks it
    total = rows * lane

    extra = {}
    if padded:
        # The padded x2d is a fresh intermediate that dies after this call, so
        # letting the output reuse its HBM buffer is free.  (Skipped on the
        # no-pad path: aliasing the caller's live x would force a copy.)
        extra["input_output_aliases"] = {1: 0}

    out2d = pl.pallas_call(
        _scale_bias_kernel,
        out_shape=jax.ShapeDtypeStruct((rows, lane), x_flat.dtype),
        grid=grid,
        in_specs=[
            # Scalars (w, b) live whole in SMEM: no per-step VMEM DMA.
            pl.BlockSpec(memory_space=pltpu.MemorySpace.SMEM),
            pl.BlockSpec((br, lane), lambda i: (i, 0)),
        ],
        out_specs=pl.BlockSpec((br, lane), lambda i: (i, 0)),
        compiler_params=pltpu.CompilerParams(
            dimension_semantics=("parallel",),
        ),
        cost_estimate=pl.CostEstimate(
            flops=2 * total,
            transcendentals=0,
            bytes_accessed=2 * total * itemsize + 8,
        ),
        **extra,
    )(wb, x2d)

    if padded:
        return out2d.reshape(total)[:n]
    return out2d.reshape(n)


def _outer_bias_kernel(x_ref, w_ref, b_ref, o_ref):
    # x_ref: (br, 1); w_ref / b_ref: (1, out_dim).  Pure VPU broadcast.
    x = x_ref[...].astype(jnp.float32)
    o_ref[...] = (x * w_ref[...].astype(jnp.float32)
                  + b_ref[...].astype(jnp.float32)).astype(o_ref.dtype)


def _outer_bias(x, weight, bias, *, block_rows=4096):
    """General out_dim > 1 fallback, tiled over the batch so large B cannot
    blow VMEM and the grid double-buffers / shards across cores."""
    B = x.shape[0]
    out_dim = weight.shape[0]
    sub = _sublane(x.dtype)
    br = _pick_block_rows(B, block_rows, sub)
    grid = (pl.cdiv(B, br),)
    # TODO(synk): out_dim is kept as-is on the lane axis; small out_dim means
    # masked partial stores (spec's default out_dim==1 uses the fast path).
    return pl.pallas_call(
        _outer_bias_kernel,
        out_shape=jax.ShapeDtypeStruct((B, out_dim), x.dtype),
        grid=grid,
        in_specs=[
            pl.BlockSpec((br, 1), lambda i: (i, 0)),
            pl.BlockSpec((1, out_dim), lambda i: (0, 0)),
            pl.BlockSpec((1, out_dim), lambda i: (0, 0)),
        ],
        out_specs=pl.BlockSpec((br, out_dim), lambda i: (i, 0)),
        compiler_params=pltpu.CompilerParams(
            dimension_semantics=("parallel",),
        ),
    )(x, weight.reshape(1, out_dim), bias.reshape(1, out_dim))


def dummy_model_forward(x, weight, bias, *, block_rows=4096):
    """Forward of nn.Linear(1, out_dim): out = x @ W^T + b.

    x: (B, 1); weight: (out_dim, 1); bias: (out_dim,).
    """
    B, in_dim = x.shape
    out_dim = weight.shape[0]
    assert in_dim == 1, "DummyModel uses nn.Linear(1, out_dim)"

    if out_dim == 1:
        wb = jnp.stack([weight[0, 0], bias[0]]).astype(jnp.float32)
        y = _lane_dense_scale_bias(x.reshape(B), wb, block_rows=block_rows)
        return y.reshape(B, 1)
    return _outer_bias(x, weight, bias, block_rows=block_rows)


if __name__ == "__main__":
    key = jax.random.PRNGKey(0)
    kx, kw, kb, kx2, kx3, kw2, kb2 = jax.random.split(key, 7)

    out_dim, in_dim = 1, 1
    bound = 1.0 / float(in_dim) ** 0.5  # nn.Linear-style uniform init bound
    weight = jax.random.uniform(kw, (out_dim, in_dim), jnp.float32, -bound, bound)
    bias = jax.random.uniform(kb, (out_dim,), jnp.float32, -bound, bound)

    # 1) Small shape consistent with the test: batch of 8 scalar features
    #    (exercises the padded-tail single-block path).
    B = 8
    x = jax.random.normal(kx, (B, in_dim), jnp.float32)
    out = jax.block_until_ready(dummy_model_forward(x, weight, bias))
    ref = x @ weight.T + bias
    assert out.shape == (B, out_dim)
    assert jnp.allclose(out, ref, atol=1e-5, rtol=1e-5)

    # 2) 128-aligned batch: pad-free / slice-free path, multi-step "parallel"
    #    grid with a masked final row-block.
    B2 = 5120
    x2 = jax.random.normal(kx2, (B2, in_dim), jnp.float32)
    out2 = jax.block_until_ready(dummy_model_forward(x2, weight, bias))
    ref2 = x2 @ weight.T + bias
    assert out2.shape == (B2, out_dim)
    assert jnp.allclose(out2, ref2, atol=1e-5, rtol=1e-5)

    # 3) Unaligned larger batch: padded multi-block path with output aliasing.
    B3 = 5000
    x3 = jax.random.normal(kx3, (B3, in_dim), jnp.float32)
    out3 = jax.block_until_ready(dummy_model_forward(x3, weight, bias))
    ref3 = x3 @ weight.T + bias
    assert out3.shape == (B3, out_dim)
    assert jnp.allclose(out3, ref3, atol=1e-5, rtol=1e-5)

    # 4) out_dim > 1 fallback (tiled over the batch).
    od = 4
    w4 = jax.random.uniform(kw2, (od, in_dim), jnp.float32, -bound, bound)
    b4 = jax.random.uniform(kb2, (od,), jnp.float32, -bound, bound)
    out4 = jax.block_until_ready(dummy_model_forward(x, w4, b4))
    ref4 = x @ w4.T + b4
    assert out4.shape == (B, od)
    assert jnp.allclose(out4, ref4, atol=1e-5, rtol=1e-5)

    print("KERNEL_OK")
</pallas_src>

<mosaic_0001>
module attributes {stable_mosaic.version = 11 : i64} {
  func.func @_scale_bias_kernel(%arg0: i32, %arg1: memref<2xf32, #tpu.memory_space<smem>>, %arg2: memref<1x128xf32, #tpu.memory_space<vmem>>, %arg3: memref<1x128xf32, #tpu.memory_space<vmem>>) attributes {dimension_semantics = [#tpu.dimension_semantics<parallel>], iteration_bounds = array<i64: 1>, scalar_prefetch = 0 : i64, scratch_operands = 0 : i64, tpu.core_type = #tpu.core_type<tc>, window_params = [{transform_indices = @transform_0, window_bounds = array<i64: 2>}, {transform_indices = @transform_1, window_bounds = array<i64: 1, 128>}, {transform_indices = @transform_2, window_bounds = array<i64: 1, 128>}]} {
    %c0 = arith.constant 0 : index
    %c0_0 = arith.constant 0 : index
    %0 = vector.load %arg2[%c0, %c0_0] : memref<1x128xf32, #tpu.memory_space<vmem>>, vector<1x128xf32>
    %c0_1 = arith.constant 0 : index
    %1 = memref.load %arg1[%c0_1] : memref<2xf32, #tpu.memory_space<smem>>
    %2 = vector.broadcast %1 : f32 to vector<1x128xf32>
    %3 = arith.mulf %0, %2 : vector<1x128xf32>
    %c1 = arith.constant 1 : index
    %4 = memref.load %arg1[%c1] : memref<2xf32, #tpu.memory_space<smem>>
    %5 = vector.broadcast %4 : f32 to vector<1x128xf32>
    %6 = arith.addf %3, %5 : vector<1x128xf32>
    %c0_2 = arith.constant 0 : index
    %c0_3 = arith.constant 0 : index
    %7 = vector.load %arg3[%c0_2, %c0_3] : memref<1x128xf32, #tpu.memory_space<vmem>>, vector<1x128xf32>
    tpu.vector_store %arg3[%c0_2, %c0_3], %6 {strides = array<i32>} : memref<1x128xf32, #tpu.memory_space<vmem>>, vector<1x128xf32>,
    return
  }
  func.func @transform_0(%arg0: i32) -> i32 {
    %c0_i32 = arith.constant 0 : i32
    %c0_i32_0 = arith.constant 0 : i32
    return %c0_i32 : i32
  }
  func.func @transform_1(%arg0: i32) -> (i32, i32) {
    %c0_i32 = arith.constant 0 : i32
    %c0_i32_0 = arith.constant 0 : i32
    return %arg0, %c0_i32 : i32, i32
  }
  func.func @transform_2(%arg0: i32) -> (i32, i32) {
    %c0_i32 = arith.constant 0 : i32
    %c0_i32_0 = arith.constant 0 : i32
    return %arg0, %c0_i32 : i32, i32
  }
}

</mosaic_0001>

<llo_original>
// kernel: tpu_custom_call.1
$region0: #{tpu_custom_call.1}
  #allocation0 [shape = 'u32[]', space=smem, size = 0x4, offset = 0x4, fixed_abs, tag = 'smem constant byte address 0x4 - core index']
  #allocation1 [shape = 'u32[72,128]{1,0:T(1,128)}', space=vmem, size = 0x9000, scoped, tag = 'internal scratch']
  %s0 = inlined_call_operand.vmem [shape: f32[2], index: 0, kind: input, shape index: {}]
  %s1 = inlined_call_operand.hbm [shape: f32[1,128], index: 1, kind: input, shape index: {}, may-alias: {1,2}]
  %s2 = inlined_call_operand.hbm [shape: f32[1,128], index: 2, kind: output, shape index: {}, may-alias: {1,2}]
  %s3 = sld [smem:[#allocation0]]
  $region26: #{tpu_custom_call.1} parent=0
    _
  %s5 = ssub.s32 1, %s3
  %s6 = scalar_select 0, %s5, %s3
  $region1: #{tpu_custom_call.1} parent=0
    #allocation2 [shape = 'u8[512]{0}', space=smem, size = 0x200, scoped, tag = 'input window, operand 0, single buffered']
    #allocation3 [shape = 's32[1]{0}', space=sflag, size = 0x4, scoped, tag = 'scoped memory for tpu_custom_call.1']
    #allocation4 [shape = 's32[1]{0}', space=sflag, size = 0x4, scoped, tag = 'scoped memory for tpu_custom_call.1']
    #allocation5 [shape = 's32[1]{0}', space=sflag, size = 0x4, scoped, tag = 'scoped memory for tpu_custom_call.1']
    #allocation6 [shape = 'u8[512]{0}', space=vmem, size = 0x400, scoped, tag = 'input window, operand 1, single buffered']
    #allocation7 [shape = 'u8[512]{0}', space=vmem, size = 0x400, scoped, tag = 'output window, operand 0, single buffered']
    %7 = vsyncpa [#allocation5], 0
    %8 = vsyncpa [#allocation3], 0
    %9 = vsyncpa [#allocation4], 0
    // Predicated region
    $region2: #{tpu_custom_call.1} parent=1 // pred_check
      _
    $region3: #{tpu_custom_call.1} parent=1 // pred_check_branch
      %11 = sbr.rel (0) target = $region5
    $region4: #{tpu_custom_call.1} parent=1 // pred_region
      %13 = vsyncadd [#allocation5], 0
      %s15 = sshll.u32 %s0, 4
      %s16 = int_to_ptr.vmem [resolvable:$true] %s15
      %18 = dma.vmem_to_smem %s16, 16, [#allocation2], [#allocation5]
    $region5: #{tpu_custom_call.1} parent=1 // pred_fallthru
      _
    // Predicated region
    $region6: #{tpu_custom_call.1} parent=1 // pred_check
      _
    $region7: #{tpu_custom_call.1} parent=1 // pred_check_branch
      %20 = sbr.rel (0) target = $region9
    $region8: #{tpu_custom_call.1} parent=1 // pred_region
      %22 = vsyncadd [#allocation3], 0
      %s24 = sshll.u32 %s1, 4
      %s25 = int_to_ptr.hbm [resolvable:$true] %s24
      %s26 = sshll.u32 [#allocation6], 4
      %s27 = int_to_ptr.vmem [resolvable:$true] %s26
      %29 = dma.hbm_to_vmem [thread:$0]  %s25, 16, %s27, [#allocation3]
    $region9: #{tpu_custom_call.1} parent=1 // pred_fallthru
      _
    // Predicated region
    $region10: #{tpu_custom_call.1} parent=1 // pred_check
      _
    $region11: #{tpu_custom_call.1} parent=1 // pred_check_branch
      %31 = sbr.rel (0) target = $region13
    $region12: #{tpu_custom_call.1} parent=1 // pred_region
      %33 = dma.done [#allocation5], 16
    $region13: #{tpu_custom_call.1} parent=1 // pred_fallthru
      _
    // Predicated region
    $region14: #{tpu_custom_call.1} parent=1 // pred_check
      _
    $region15: #{tpu_custom_call.1} parent=1 // pred_check_branch
      %35 = sbr.rel (0) target = $region17
    $region16: #{tpu_custom_call.1} parent=1 // pred_region
      %37 = dma.done [#allocation3], 16
    $region17: #{tpu_custom_call.1} parent=1 // pred_fallthru
      _
    %38 = sfence
    %v39 = vld [vmem:[#allocation6] sm:$0x1]
    %s40 = sld [smem:[#allocation2]]
    %v41 = vstv %s40
    %v42 = vmul.f32 %v39, %v41
    %s43 = sld [smem:[#allocation2 + $0x1]]
    %v44 = vstv %s43
    %v45 = vadd.f32 %v42, %v44
    %46 = vst [vmem:[#allocation7] sm:$0x1] %v45
    // Predicated region
    $region18: #{tpu_custom_call.1} parent=1 // pred_check
      _
    $region19: #{tpu_custom_call.1} parent=1 // pred_check_branch
      %48 = sbr.rel (0) target = $region21
    $region20: #{tpu_custom_call.1} parent=1 // pred_region
      %50 = vsyncadd [#allocation4], 0
      %s52 = sshll.u32 [#allocation7], 4
      %s53 = int_to_ptr.vmem [resolvable:$true] %s52
      %s54 = sshll.u32 %s2, 4
      %s55 = int_to_ptr.hbm [resolvable:$true] %s54
      %57 = dma.vmem_to_hbm [thread:$0]  %s53, 16, %s55, [#allocation4]
    $region21: #{tpu_custom_call.1} parent=1 // pred_fallthru
      _
    // Predicated region
    $region22: #{tpu_custom_call.1} parent=1 // pred_check
      _
    $region23: #{tpu_custom_call.1} parent=1 // pred_check_branch
      %59 = sbr.rel (0) target = $region25
    $region24: #{tpu_custom_call.1} parent=1 // pred_region
      %61 = dma.done [#allocation4], 16
    $region25: #{tpu_custom_call.1} parent=1 // pred_fallthru
      _
    %62 = vsyncpa [#allocation3], 1
    %63 = vsyncpa [#allocation4], 1
    %64 = vsyncpa [#allocation5], 1

</llo_original>
